<compile_context>
chip_gen: v6e
topology: v6e:2x2x1
jax: 0.10.0
libtpu: 0.0.40
codegen_flags: <defaults>
</compile_context>

<pallas_src>
import functools

import jax
import jax.numpy as jnp
from jax.experimental import pallas as pl
from jax.experimental.pallas import tpu as pltpu

H1, H2, OUT = 128, 256, 1


def value_kernel(xt_ref, w1_ref, b1_ref, w2_ref, b2_ref, w3_ref, b3_ref, out_ref):
    # One batch tile (batch on lanes):
    #   h1 = tanh(W1 @ x^T + b1)   (H1, tb)
    #   h2 = tanh(W2 @ h1 + b2)    (H2, tb)
    #   v  = W3 @ h2 + b3          (1,  tb)   <- lane-dense output block
    w_dtype = w2_ref.dtype  # bf16 when use_bf16, f32 otherwise
    h1 = jnp.tanh(
        jnp.dot(w1_ref[...], xt_ref[...], preferred_element_type=jnp.float32)
        + b1_ref[...]
    )
    h2 = jnp.tanh(
        jnp.dot(w2_ref[...], h1.astype(w_dtype), preferred_element_type=jnp.float32)
        + b2_ref[...]
    )
    v = (
        jnp.dot(w3_ref[...], h2.astype(w_dtype), preferred_element_type=jnp.float32)
        + b3_ref[...]
    )
    out_ref[...] = v.astype(out_ref.dtype)


def _round_up(n, m):
    return ((n + m - 1) // m) * m


@functools.partial(jax.jit, static_argnames=("block_b", "use_bf16"))
def value_network_forward(x, params, *, block_b=1024, use_bf16=False):
    """ValueNetwork forward. x: (B, ob_dim) f32 -> (B, 1) f32."""
    w1, b1, w2, b2, w3, b3 = params
    B, ob_dim = x.shape

    # ---- batch tiling ----
    if B >= 512:
        # Large batch: tile in multiples of 256 (fills the 256-wide v6e/v7x
        # MXU; also a multiple of 128 for v5e), capped at block_b, and split
        # into >=2 tiles so v7x's second TensorCore gets work.
        tb = min(block_b, _round_up(-(-B // 2), 256))
    else:
        # Small batch: a single tile rounded to the 8-row sublane granule,
        # so padding waste stays tiny.
        tb = _round_up(B, 8)
    B_pad = _round_up(B, tb)
    n_tiles = B_pad // tb

    # Batch on the lane axis: transpose once here (cheap layout plumbing) so
    # every layer inside the kernel is lane-dense and the (1, tb) output block
    # is stored with unmasked full-width vst + contiguous writeback DMA.
    xt = x.T  # (ob_dim, B)
    if B_pad != B:
        xt = jnp.pad(xt, ((0, 0), (0, B_pad - B)))
    if use_bf16:
        # bf16 MXU operands; biases, tanh and accumulation stay f32.
        xt = xt.astype(jnp.bfloat16)
        w1, w2, w3 = (w.astype(jnp.bfloat16) for w in (w1, w2, w3))

    # Weights/biases: constant index_map -> DMA'd once, VMEM-resident across
    # all batch tiles.  x/out are tiled along the (lane) batch axis so Pallas
    # double-buffers them (prefetch tile i+1 while computing tile i).
    resident = lambda a: pl.BlockSpec(a.shape, lambda i: (0, 0))

    cost = pl.CostEstimate(
        flops=2 * B_pad * (ob_dim * H1 + H1 * H2 + H2 * OUT),
        transcendentals=B_pad * (H1 + H2),
        bytes_accessed=(
            xt.size * xt.dtype.itemsize
            + B_pad * OUT * 4
            + sum(a.size * a.dtype.itemsize for a in (w1, b1, w2, b2, w3, b3))
        ),
    )

    out = pl.pallas_call(
        value_kernel,
        out_shape=jax.ShapeDtypeStruct((OUT, B_pad), jnp.float32),
        grid=(n_tiles,),
        in_specs=[
            pl.BlockSpec((ob_dim, tb), lambda i: (0, i)),
            resident(w1), resident(b1),
            resident(w2), resident(b2),
            resident(w3), resident(b3),
        ],
        out_specs=pl.BlockSpec((OUT, tb), lambda i: (0, i)),
        compiler_params=pltpu.CompilerParams(
            # Batch tiles are independent -> split across TensorCores (v7x).
            dimension_semantics=("parallel",),
        ),
        cost_estimate=cost,
    )(xt, w1, b1, w2, b2, w3, b3)

    return out[0, :B, None]  # (B, 1)


def init_params(key, ob_dim):
    """nn.Linear-style init U(-1/sqrt(fan_in), 1/sqrt(fan_in)).

    Weights are stored in the PyTorch (out_features, in_features) layout,
    biases as (out_features, 1) columns (batch-on-lanes kernel layout)."""
    def linear(k, fan_in, fan_out):
        kw, kb = jax.random.split(k)
        bound = 1.0 / jnp.sqrt(jnp.float32(fan_in))
        w = jax.random.uniform(kw, (fan_out, fan_in), jnp.float32, -bound, bound)
        b = jax.random.uniform(kb, (fan_out, 1), jnp.float32, -bound, bound)
        return w, b

    k1, k2, k3 = jax.random.split(key, 3)
    w1, b1 = linear(k1, ob_dim, H1)
    w2, b2 = linear(k2, H1, H2)
    w3, b3 = linear(k3, H2, OUT)
    return (w1, b1, w2, b2, w3, b3)


def reference_forward(x, params):
    w1, b1, w2, b2, w3, b3 = params
    h1 = jnp.tanh(w1 @ x.T + b1)   # (H1, B)
    h2 = jnp.tanh(w2 @ h1 + b2)    # (H2, B)
    v = w3 @ h2 + b3               # (1,  B)
    return v.T                     # (B, 1)


if __name__ == "__main__":
    key = jax.random.PRNGKey(0)
    k_params, k_x1, k_x2 = jax.random.split(key, 3)

    ob_dim = 8
    params = init_params(k_params, ob_dim)

    # Small batch: single 8-row tile (shrink-to-sublane-granule path).
    x_small = jax.random.normal(k_x1, (8, ob_dim), jnp.float32)
    v_small = jax.block_until_ready(value_network_forward(x_small, params))
    assert v_small.shape == (8, 1)
    assert jnp.allclose(v_small, reference_forward(x_small, params), atol=1e-5, rtol=1e-5)

    # Larger batch: exercises padding + the >=2-tile parallel grid path
    # (B=600 -> tb=512, B_pad=1024, 2 tiles).
    x_big = jax.random.normal(k_x2, (600, ob_dim), jnp.float32)
    v_big = jax.block_until_ready(value_network_forward(x_big, params))
    assert v_big.shape == (600, 1)
    assert jnp.allclose(v_big, reference_forward(x_big, params), atol=1e-5, rtol=1e-5)

    # Optional bf16-MXU-operand path (HBM-bandwidth win, esp. v5e); slightly
    # perturbed numerics vs the f32 reference -> looser tolerance.
    v_bf16 = jax.block_until_ready(value_network_forward(x_big, params, use_bf16=True))
    assert v_bf16.shape == (600, 1)
    assert jnp.allclose(v_bf16, reference_forward(x_big, params), atol=3e-2, rtol=3e-2)

    print("KERNEL_OK")
</pallas_src>

<mosaic_0001>
module attributes {stable_mosaic.version = 11 : i64} {
  func.func @value_kernel(%arg0: i32, %arg1: memref<8x8xf32, #tpu.memory_space<vmem>>, %arg2: memref<128x8xf32, #tpu.memory_space<vmem>>, %arg3: memref<128x1xf32, #tpu.memory_space<vmem>>, %arg4: memref<256x128xf32, #tpu.memory_space<vmem>>, %arg5: memref<256x1xf32, #tpu.memory_space<vmem>>, %arg6: memref<1x256xf32, #tpu.memory_space<vmem>>, %arg7: memref<1x1xf32, #tpu.memory_space<vmem>>, %arg8: memref<1x8xf32, #tpu.memory_space<vmem>>) attributes {dimension_semantics = [#tpu.dimension_semantics<parallel>], iteration_bounds = array<i64: 1>, scalar_prefetch = 0 : i64, scratch_operands = 0 : i64, tpu.core_type = #tpu.core_type<tc>, window_params = [{transform_indices = @transform_0, window_bounds = array<i64: 8, 8>}, {pipeline_mode = #tpu.pipeline_mode<synchronous>, transform_indices = @transform_1, window_bounds = array<i64: 128, 8>}, {pipeline_mode = #tpu.pipeline_mode<synchronous>, transform_indices = @transform_2, window_bounds = array<i64: 128, 1>}, {pipeline_mode = #tpu.pipeline_mode<synchronous>, transform_indices = @transform_3, window_bounds = array<i64: 256, 128>}, {pipeline_mode = #tpu.pipeline_mode<synchronous>, transform_indices = @transform_4, window_bounds = array<i64: 256, 1>}, {pipeline_mode = #tpu.pipeline_mode<synchronous>, transform_indices = @transform_5, window_bounds = array<i64: 1, 256>}, {pipeline_mode = #tpu.pipeline_mode<synchronous>, transform_indices = @transform_6, window_bounds = array<i64: 1, 1>}, {transform_indices = @transform_7, window_bounds = array<i64: 1, 8>}]} {
    %c0 = arith.constant 0 : index
    %c0_0 = arith.constant 0 : index
    %0 = vector.load %arg2[%c0, %c0_0] : memref<128x8xf32, #tpu.memory_space<vmem>>, vector<128x8xf32>
    %c0_1 = arith.constant 0 : index
    %c0_2 = arith.constant 0 : index
    %1 = vector.load %arg1[%c0_1, %c0_2] : memref<8x8xf32, #tpu.memory_space<vmem>>, vector<8x8xf32>
    %cst = arith.constant dense<0.000000e+00> : vector<128x8xf32>
    %2 = tpu.matmul %0, %1, %cst {dimension_numbers = #tpu.dot_dimension_numbers<[1], [0], [0], [1], [0, 0, 1, 1], [], []>} : vector<128x8xf32>, vector<8x8xf32>, vector<128x8xf32> -> vector<128x8xf32>
    %c0_3 = arith.constant 0 : index
    %c0_4 = arith.constant 0 : index
    %3 = vector.load %arg3[%c0_3, %c0_4] : memref<128x1xf32, #tpu.memory_space<vmem>>, vector<128x1xf32>
    %4 = vector.broadcast %3 : vector<128x1xf32> to vector<128x8xf32>
    %5 = arith.addf %2, %4 : vector<128x8xf32>
    %6 = math.tanh %5 : vector<128x8xf32>
    %c0_5 = arith.constant 0 : index
    %c0_6 = arith.constant 0 : index
    %7 = vector.load %arg4[%c0_5, %c0_6] : memref<256x128xf32, #tpu.memory_space<vmem>>, vector<256x128xf32>
    %cst_7 = arith.constant dense<0.000000e+00> : vector<256x8xf32>
    %8 = tpu.matmul %7, %6, %cst_7 {dimension_numbers = #tpu.dot_dimension_numbers<[1], [0], [0], [1], [0, 0, 1, 1], [], []>} : vector<256x128xf32>, vector<128x8xf32>, vector<256x8xf32> -> vector<256x8xf32>
    %c0_8 = arith.constant 0 : index
    %c0_9 = arith.constant 0 : index
    %9 = vector.load %arg5[%c0_8, %c0_9] : memref<256x1xf32, #tpu.memory_space<vmem>>, vector<256x1xf32>
    %10 = vector.broadcast %9 : vector<256x1xf32> to vector<256x8xf32>
    %11 = arith.addf %8, %10 : vector<256x8xf32>
    %12 = math.tanh %11 : vector<256x8xf32>
    %c0_10 = arith.constant 0 : index
    %c0_11 = arith.constant 0 : index
    %13 = vector.load %arg6[%c0_10, %c0_11] : memref<1x256xf32, #tpu.memory_space<vmem>>, vector<1x256xf32>
    %cst_12 = arith.constant dense<0.000000e+00> : vector<1x8xf32>
    %14 = tpu.matmul %13, %12, %cst_12 {dimension_numbers = #tpu.dot_dimension_numbers<[1], [0], [0], [1], [0, 0, 1, 1], [], []>} : vector<1x256xf32>, vector<256x8xf32>, vector<1x8xf32> -> vector<1x8xf32>
    %c0_13 = arith.constant 0 : index
    %c0_14 = arith.constant 0 : index
    %15 = vector.load %arg7[%c0_13, %c0_14] : memref<1x1xf32, #tpu.memory_space<vmem>>, vector<1x1xf32>
    %16 = vector.broadcast %15 : vector<1x1xf32> to vector<1x8xf32>
    %17 = arith.addf %14, %16 : vector<1x8xf32>
    %c0_15 = arith.constant 0 : index
    %c0_16 = arith.constant 0 : index
    %18 = vector.load %arg8[%c0_15, %c0_16] : memref<1x8xf32, #tpu.memory_space<vmem>>, vector<1x8xf32>
    tpu.vector_store %arg8[%c0_15, %c0_16], %17 {strides = array<i32>} : memref<1x8xf32, #tpu.memory_space<vmem>>, vector<1x8xf32>,
    return
  }
  func.func @transform_0(%arg0: i32) -> (i32, i32) {
    %c0_i32 = arith.constant 0 : i32
    %c0_i32_0 = arith.constant 0 : i32
    return %c0_i32, %arg0 : i32, i32
  }
  func.func @transform_1(%arg0: i32) -> (i32, i32) {
    %c0_i32 = arith.constant 0 : i32
    %c0_i32_0 = arith.constant 0 : i32
    %c0_i32_1 = arith.constant 0 : i32
    return %c0_i32, %c0_i32_0 : i32, i32
  }
  func.func @transform_2(%arg0: i32) -> (i32, i32) {
    %c0_i32 = arith.constant 0 : i32
    %c0_i32_0 = arith.constant 0 : i32
    %c0_i32_1 = arith.constant 0 : i32
    return %c0_i32, %c0_i32_0 : i32, i32
  }
  func.func @transform_3(%arg0: i32) -> (i32, i32) {
    %c0_i32 = arith.constant 0 : i32
    %c0_i32_0 = arith.constant 0 : i32
    %c0_i32_1 = arith.constant 0 : i32
    return %c0_i32, %c0_i32_0 : i32, i32
  }
  func.func @transform_4(%arg0: i32) -> (i32, i32) {
    %c0_i32 = arith.constant 0 : i32
    %c0_i32_0 = arith.constant 0 : i32
    %c0_i32_1 = arith.constant 0 : i32
    return %c0_i32, %c0_i32_0 : i32, i32
  }
  func.func @transform_5(%arg0: i32) -> (i32, i32) {
    %c0_i32 = arith.constant 0 : i32
    %c0_i32_0 = arith.constant 0 : i32
    %c0_i32_1 = arith.constant 0 : i32
    return %c0_i32, %c0_i32_0 : i32, i32
  }
  func.func @transform_6(%arg0: i32) -> (i32, i32) {
    %c0_i32 = arith.constant 0 : i32
    %c0_i32_0 = arith.constant 0 : i32
    %c0_i32_1 = arith.constant 0 : i32
    return %c0_i32, %c0_i32_0 : i32, i32
  }
  func.func @transform_7(%arg0: i32) -> (i32, i32) {
    %c0_i32 = arith.constant 0 : i32
    %c0_i32_0 = arith.constant 0 : i32
    return %c0_i32, %arg0 : i32, i32
  }
}

</mosaic_0001>

<llo_original>
// kernel: value_network_forward.1
$region0: #{value_network_forward.1}
  #allocation0 [shape = 'u32[]', space=smem, size = 0x4, offset = 0x4, fixed_abs, tag = 'smem constant byte address 0x4 - core index']
  #allocation1 [shape = 'u32[144,128]{1,0:T(1,128)}', space=vmem, size = 0x12000, scoped, tag = 'internal scratch']
  #allocation2 [shape = 'f32[1,1]{1,0:T(1,128)S(1)}', space=vmem, size = 0x200, scoped, tag = 'scoped memory for value_network_forward.1']
  %s0 = inlined_call_operand.vmem [shape: f32[8,8], index: 0, kind: input, shape index: {}]
  %s1 = inlined_call_operand.vmem [shape: f32[128,8], index: 1, kind: input, shape index: {}]
  %s2 = inlined_call_operand.vmem [shape: f32[128,1], index: 2, kind: input, shape index: {}]
  %s3 = inlined_call_operand.vmem [shape: f32[256,128], index: 3, kind: input, shape index: {}]
  %s4 = inlined_call_operand.vmem [shape: f32[256,1], index: 4, kind: input, shape index: {}]
  %s5 = inlined_call_operand.vmem [shape: f32[1,256], index: 5, kind: input, shape index: {}]
  %s6 = inlined_call_operand.<no memory space> [shape: f32[1,1], index: 6, kind: input, shape index: {}]
  %s7 = inlined_call_operand.hbm [shape: f32[1,8], index: 7, kind: output, shape index: {}]
  %s8 = sld [smem:[#allocation0]]
  $region38: #{value_network_forward.1} parent=0
    _
  %s10 = ssub.s32 1, %s8
  %s11 = scalar_select 0, %s10, %s8
  %v12 = vstv %s6
  %13 = vst [vmem:[#allocation2] sm:$0x1] %v12
  $region1: #{value_network_forward.1} parent=0
    #allocation3 [shape = 'u8[512]{0}', space=vmem, size = 0x400, scoped, tag = 'output window, operand 0, single buffered']
    #allocation4 [shape = 's32[1]{0}', space=sflag, size = 0x4, scoped, tag = 'scoped memory for value_network_forward.1']
    %14 = vsyncpa [#allocation4], 0
    // Predicated region
    $region2: #{value_network_forward.1} parent=1 // pred_check
      _
    $region3: #{value_network_forward.1} parent=1 // pred_check_branch
      %16 = sbr.rel (0) target = $region5
    $region4: #{value_network_forward.1} parent=1 // pred_region
      _
    $region5: #{value_network_forward.1} parent=1 // pred_fallthru
      _
    // Predicated region
    $region6: #{value_network_forward.1} parent=1 // pred_check
      _
    $region7: #{value_network_forward.1} parent=1 // pred_check_branch
      %18 = sbr.rel (0) target = $region9
    $region8: #{value_network_forward.1} parent=1 // pred_region
      _
    $region9: #{value_network_forward.1} parent=1 // pred_fallthru
      _
    // Predicated region
    $region10: #{value_network_forward.1} parent=1 // pred_check
      _
    $region11: #{value_network_forward.1} parent=1 // pred_check_branch
      %20 = sbr.rel (0) target = $region13
    $region12: #{value_network_forward.1} parent=1 // pred_region
      _
    $region13: #{value_network_forward.1} parent=1 // pred_fallthru
      _
    // Predicated region
    $region14: #{value_network_forward.1} parent=1 // pred_check
      _
    $region15: #{value_network_forward.1} parent=1 // pred_check_branch
      %22 = sbr.rel (0) target = $region17
    $region16: #{value_network_forward.1} parent=1 // pred_region
      _
    $region17: #{value_network_forward.1} parent=1 // pred_fallthru
      _
    // Predicated region
    $region18: #{value_network_forward.1} parent=1 // pred_check
      _
    $region19: #{value_network_forward.1} parent=1 // pred_check_branch
      %24 = sbr.rel (0) target = $region21
    $region20: #{value_network_forward.1} parent=1 // pred_region
      _
    $region21: #{value_network_forward.1} parent=1 // pred_fallthru
      _
    // Predicated region
    $region22: #{value_network_forward.1} parent=1 // pred_check
      _
    $region23: #{value_network_forward.1} parent=1 // pred_check_branch
      %26 = sbr.rel (0) target = $region25
    $region24: #{value_network_forward.1} parent=1 // pred_region
      _
    $region25: #{value_network_forward.1} parent=1 // pred_fallthru
      _
    // Predicated region
    $region26: #{value_network_forward.1} parent=1 // pred_check
      _
    $region27: #{value_network_forward.1} parent=1 // pred_check_branch
      %28 = sbr.rel (0) target = $region29
    $region28: #{value_network_forward.1} parent=1 // pred_region
      _
    $region29: #{value_network_forward.1} parent=1 // pred_fallthru
      _
    %v29 = vld [vmem:[%s1] sm:$0xff]
    %v30 = vld [vmem:[%s1 + $0x8] sm:$0xff]
    %v31 = vld [vmem:[%s1 + $0x10] sm:$0xff]
    %v32 = vld [vmem:[%s1 + $0x18] sm:$0xff]
    %v33 = vld [vmem:[%s1 + $0x20] sm:$0xff]
    %v34 = vld [vmem:[%s1 + $0x28] sm:$0xff]
    %v35 = vld [vmem:[%s1 + $0x30] sm:$0xff]
    %v36 = vld [vmem:[%s1 + $0x38] sm:$0xff]
    %v37 = vld [vmem:[%s1 + $0x40] sm:$0xff]
    %v38 = vld [vmem:[%s1 + $0x48] sm:$0xff]
    %v39 = vld [vmem:[%s1 + $0x50] sm:$0xff]
    %v40 = vld [vmem:[%s1 + $0x58] sm:$0xff]
    %v41 = vld [vmem:[%s1 + $0x60] sm:$0xff]
    %v42 = vld [vmem:[%s1 + $0x68] sm:$0xff]
    %v43 = vld [vmem:[%s1 + $0x70] sm:$0xff]
    %v44 = vld [vmem:[%s1 + $0x78] sm:$0xff]
    %v45 = vld [vmem:[%s0] sm:$0xff]
    %v46 = vld [vmem:[%s2] sm:$0xff]
    %v47 = vld [vmem:[%s2 + $0x8] sm:$0xff]
    %v48 = vld [vmem:[%s2 + $0x10] sm:$0xff]
    %v49 = vld [vmem:[%s2 + $0x18] sm:$0xff]
    %v50 = vld [vmem:[%s2 + $0x20] sm:$0xff]
    %v51 = vld [vmem:[%s2 + $0x28] sm:$0xff]
    %v52 = vld [vmem:[%s2 + $0x30] sm:$0xff]
    %v53 = vld [vmem:[%s2 + $0x38] sm:$0xff]
    %v54 = vld [vmem:[%s2 + $0x40] sm:$0xff]
    %v55 = vld [vmem:[%s2 + $0x48] sm:$0xff]
    %v56 = vld [vmem:[%s2 + $0x50] sm:$0xff]
    %v57 = vld [vmem:[%s2 + $0x58] sm:$0xff]
    %v58 = vld [vmem:[%s2 + $0x60] sm:$0xff]
    %v59 = vld [vmem:[%s2 + $0x68] sm:$0xff]
    %v60 = vld [vmem:[%s2 + $0x70] sm:$0xff]
    %v61 = vld [vmem:[%s2 + $0x78] sm:$0xff]
    %63 = vset.pattern.permute.xlu0 0
    %64 = vperm.xlu0 %63, %v46
    %v65 = vpop.permute.xlu0 %64
    %68 = vset.pattern.permute.xlu0 0
    %69 = vperm.xlu0 %68, %v47
    %v70 = vpop.permute.xlu0 %69
    %73 = vset.pattern.permute.xlu0 0
    %74 = vperm.xlu0 %73, %v48
    %v75 = vpop.permute.xlu0 %74
    %78 = vset.pattern.permute.xlu0 0
    %79 = vperm.xlu0 %78, %v49
    %v80 = vpop.permute.xlu0 %79
    %83 = vset.pattern.permute.xlu0 0
    %84 = vperm.xlu0 %83, %v50
    %v85 = vpop.permute.xlu0 %84
    %88 = vset.pattern.permute.xlu0 0
    %89 = vperm.xlu0 %88, %v51
    %v90 = vpop.permute.xlu0 %89
    %93 = vset.pattern.permute.xlu0 0
    %94 = vperm.xlu0 %93, %v52
    %v95 = vpop.permute.xlu0 %94
    %98 = vset.pattern.permute.xlu0 0
    %99 = vperm.xlu0 %98, %v53
    %v100 = vpop.permute.xlu0 %99
    %103 = vset.pattern.permute.xlu0 0
    %104 = vperm.xlu0 %103, %v54
    %v105 = vpop.permute.xlu0 %104
    %108 = vset.pattern.permute.xlu0 0
    %109 = vperm.xlu0 %108, %v55
    %v110 = vpop.permute.xlu0 %109
    %113 = vset.pattern.permute.xlu0 0
    %114 = vperm.xlu0 %113, %v56
    %v115 = vpop.permute.xlu0 %114
    %118 = vset.pattern.permute.xlu0 0
    %119 = vperm.xlu0 %118, %v57
    %v120 = vpop.permute.xlu0 %119
    %123 = vset.pattern.permute.xlu0 0
    %124 = vperm.xlu0 %123, %v58
    %v125 = vpop.permute.xlu0 %124
    %128 = vset.pattern.permute.xlu0 0
    %129 = vperm.xlu0 %128, %v59
    %v130 = vpop.permute.xlu0 %129
    %133 = vset.pattern.permute.xlu0 0
    %134 = vperm.xlu0 %133, %v60
    %v135 = vpop.permute.xlu0 %134
    %138 = vset.pattern.permute.xlu0 0
    %139 = vperm.xlu0 %138, %v61
    %v140 = vpop.permute.xlu0 %139
    %vm142 = vcmask 64512
    %v144 = vsel %vm142, %v29, 0
    %v147 = vsel %vm142, %v30, 0
    %v150 = vsel %vm142, %v31, 0
    %v153 = vsel %vm142, %v32, 0
    %v156 = vsel %vm142, %v33, 0
    %v159 = vsel %vm142, %v34, 0
    %v162 = vsel %vm142, %v35, 0
    %v165 = vsel %vm142, %v36, 0
    %v168 = vsel %vm142, %v37, 0
    %v171 = vsel %vm142, %v38, 0
    %v174 = vsel %vm142, %v39, 0
    %v177 = vsel %vm142, %v40, 0
    %v180 = vsel %vm142, %v41, 0
    %v183 = vsel %vm142, %v42, 0
    %v186 = vsel %vm142, %v43, 0
    %v189 = vsel %vm142, %v44, 0
    %191 = vmatprep.subr.mxu0 0.0
    %192 = vmatpush1.msra.mxu0 0.0
    %193 = vmatprep.subr.mxu0 0.0
    %194 = vmatpush1.msra.mxu0 0.0
    %195 = vmatprep.subr.mxu0 0.0
    %196 = vmatpush1.msra.mxu0 0.0
    %197 = vmatprep.subr.mxu0 0.0
    %198 = vmatpush1.msra.mxu0 0.0
    %199 = vmatprep.subr.mxu0 0.0
    %200 = vmatpush1.msra.mxu0 0.0
    %201 = vmatprep.subr.mxu0 0.0
    %202 = vmatpush1.msra.mxu0 0.0
    %203 = vmatprep.subr.mxu0 0.0
    %204 = vmatpush1.msra.mxu0 0.0
    %205 = vmatprep.subr.mxu0 0.0
    %206 = vmatpush1.msra.mxu0 0.0
    %207 = vmatprep.subr.mxu0 0.0
    %208 = vmatpush1.msra.mxu0 0.0
    %209 = vmatprep.subr.mxu0 0.0
    %210 = vmatpush1.msra.mxu0 0.0
    %211 = vmatprep.subr.mxu0 0.0
    %212 = vmatpush1.msra.mxu0 0.0
    %213 = vmatprep.subr.mxu0 0.0
    %214 = vmatpush1.msra.mxu0 0.0
    %215 = vmatprep.subr.mxu0 0.0
    %216 = vmatpush1.msra.mxu0 0.0
    %217 = vmatprep.subr.mxu0 0.0
    %218 = vmatpush1.msra.mxu0 0.0
    %219 = vmatprep.subr.mxu0 0.0
    %220 = vmatpush1.msra.mxu0 0.0
    %221 = vmatprep.subr.mxu0 0.0
    %222 = vmatpush1.msra.mxu0 %v45
    %223 = vmatprep.subr.mxu0 0.0
    %224 = vmatpush2.msra.mxu0 0.0
    %225 = vmatprep.subr.mxu0 0.0
    %226 = vmatpush2.msra.mxu0 0.0
    %227 = vmatprep.subr.mxu0 0.0
    %228 = vmatpush2.msra.mxu0 0.0
    %229 = vmatprep.subr.mxu0 0.0
    %230 = vmatpush2.msra.mxu0 0.0
    %231 = vmatprep.subr.mxu0 0.0
    %232 = vmatpush2.msra.mxu0 0.0
    %233 = vmatprep.subr.mxu0 0.0
    %234 = vmatpush2.msra.mxu0 0.0
    %235 = vmatprep.subr.mxu0 0.0
    %236 = vmatpush2.msra.mxu0 0.0
    %237 = vmatprep.subr.mxu0 0.0
    %238 = vmatpush2.msra.mxu0 0.0
    %239 = vmatprep.subr.mxu0 0.0
    %240 = vmatpush2.msra.mxu0 0.0
    %241 = vmatprep.subr.mxu0 0.0
    %242 = vmatpush2.msra.mxu0 0.0
    %243 = vmatprep.subr.mxu0 0.0
    %244 = vmatpush2.msra.mxu0 0.0
    %245 = vmatprep.subr.mxu0 0.0
    %246 = vmatpush2.msra.mxu0 0.0
    %247 = vmatprep.subr.mxu0 0.0
    %248 = vmatpush2.msra.mxu0 0.0
    %249 = vmatprep.subr.mxu0 0.0
    %250 = vmatpush2.msra.mxu0 0.0
    %251 = vmatprep.subr.mxu0 0.0
    %252 = vmatpush2.msra.mxu0 0.0
    %253 = vmatprep.subr.mxu0 0.0
    %254 = vmatpush2.msra.mxu0 0.0
    %255 = vmatprep.mubr.f32.mxu0 0.0
    %256 = vmatmul.mubr.f32.gmra.mxu0 %v144
    %v257 = vpop.f32.mrf.mxu0
    %v258 = vadd.f32 %v65, %v257
    %v259 = vpop.f32.mrf.mxu0
    %260 = vmatprep.mubr.f32.mxu0 0.0
    %261 = vmatmul.mubr.f32.gmra.mxu0 %v147
    %v262 = vpop.f32.mrf.mxu0
    %v263 = vadd.f32 %v70, %v262
    %v264 = vpop.f32.mrf.mxu0
    %265 = vmatprep.mubr.f32.mxu0 0.0
    %266 = vmatmul.mubr.f32.gmra.mxu0 %v150
    %v267 = vpop.f32.mrf.mxu0
    %v268 = vadd.f32 %v75, %v267
    %v269 = vpop.f32.mrf.mxu0
    %270 = vmatprep.mubr.f32.mxu0 0.0
    %271 = vmatmul.mubr.f32.gmra.mxu0 %v153
    %v272 = vpop.f32.mrf.mxu0
    %v273 = vadd.f32 %v80, %v272
    %v274 = vpop.f32.mrf.mxu0
    %275 = vmatprep.mubr.f32.mxu0 0.0
    %276 = vmatmul.mubr.f32.gmra.mxu0 %v156
    %v277 = vpop.f32.mrf.mxu0
    %v278 = vadd.f32 %v85, %v277
    %v279 = vpop.f32.mrf.mxu0
    %280 = vmatprep.mubr.f32.mxu0 0.0
    %281 = vmatmul.mubr.f32.gmra.mxu0 %v159
    %v282 = vpop.f32.mrf.mxu0
    %v283 = vadd.f32 %v90, %v282
    %v284 = vpop.f32.mrf.mxu0
    %285 = vmatprep.mubr.f32.mxu0 0.0
    %286 = vmatmul.mubr.f32.gmra.mxu0 %v162
    %v287 = vpop.f32.mrf.mxu0
    %v288 = vadd.f32 %v95, %v287
    %v289 = vpop.f32.mrf.mxu0
    %290 = vmatprep.mubr.f32.mxu0 0.0
    %291 = vmatmul.mubr.f32.gmra.mxu0 %v165
    %v292 = vpop.f32.mrf.mxu0
    %v293 = vadd.f32 %v100, %v292
    %v294 = vpop.f32.mrf.mxu0
    %295 = vmatprep.mubr.f32.mxu0 0.0
    %296 = vmatmul.mubr.f32.gmra.mxu0 %v168
    %v297 = vpop.f32.mrf.mxu0
    %v298 = vadd.f32 %v105, %v297
    %v299 = vpop.f32.mrf.mxu0
    %300 = vmatprep.mubr.f32.mxu0 0.0
    %301 = vmatmul.mubr.f32.gmra.mxu0 %v171
    %v302 = vpop.f32.mrf.mxu0
    %v303 = vadd.f32 %v110, %v302
    %v304 = vpop.f32.mrf.mxu0
    %305 = vmatprep.mubr.f32.mxu0 0.0
    %306 = vmatmul.mubr.f32.gmra.mxu0 %v174
    %v307 = vpop.f32.mrf.mxu0
    %v308 = vadd.f32 %v115, %v307
    %v309 = vpop.f32.mrf.mxu0
    %310 = vmatprep.mubr.f32.mxu0 0.0
    %311 = vmatmul.mubr.f32.gmra.mxu0 %v177
    %v312 = vpop.f32.mrf.mxu0
    %v313 = vadd.f32 %v120, %v312
    %v314 = vpop.f32.mrf.mxu0
    %315 = vmatprep.mubr.f32.mxu0 0.0
    %316 = vmatmul.mubr.f32.gmra.mxu0 %v180
    %v317 = vpop.f32.mrf.mxu0
    %v318 = vadd.f32 %v125, %v317
    %v319 = vpop.f32.mrf.mxu0
    %320 = vmatprep.mubr.f32.mxu0 0.0
    %321 = vmatmul.mubr.f32.gmra.mxu0 %v183
    %v322 = vpop.f32.mrf.mxu0
    %v323 = vadd.f32 %v130, %v322
    %v324 = vpop.f32.mrf.mxu0
    %325 = vmatprep.mubr.f32.mxu0 0.0
    %326 = vmatmul.mubr.f32.gmra.mxu0 %v186
    %v327 = vpop.f32.mrf.mxu0
    %v328 = vadd.f32 %v135, %v327
    %v329 = vpop.f32.mrf.mxu0
    %330 = vmatprep.mubr.f32.mxu0 0.0
    %331 = vmatmul.mubr.f32.gmra.mxu0 %v189
    %v332 = vpop.f32.mrf.mxu0
    %v333 = vadd.f32 %v140, %v332
    %v334 = vpop.f32.mrf.mxu0
    %335 = vdwg.mxu0
    %v336 = vtanh.pop %v258
    %v337 = vtanh.pop %v263
    %v338 = vtanh.pop %v268
    %v339 = vtanh.pop %v273
    %v340 = vtanh.pop %v278
    %v341 = vtanh.pop %v283
    %v342 = vtanh.pop %v288
    %v343 = vtanh.pop %v293
    %v344 = vtanh.pop %v298
    %v345 = vtanh.pop %v303
    %v346 = vtanh.pop %v308
    %v347 = vtanh.pop %v313
    %v348 = vtanh.pop %v318
    %v349 = vtanh.pop %v323
    %v350 = vtanh.pop %v328
    %v351 = vtanh.pop %v333
    %v352 = vld [vmem:[%s3] sm:$0xff]
    %v353 = vld [vmem:[%s3 + $0x8] sm:$0xff]
    %v354 = vld [vmem:[%s3 + $0x10] sm:$0xff]
    %v355 = vld [vmem:[%s3 + $0x18] sm:$0xff]
    %v356 = vld [vmem:[%s3 + $0x20] sm:$0xff]
    %v357 = vld [vmem:[%s3 + $0x28] sm:$0xff]
    %v358 = vld [vmem:[%s3 + $0x30] sm:$0xff]
    %v359 = vld [vmem:[%s3 + $0x38] sm:$0xff]
    %v360 = vld [vmem:[%s3 + $0x40] sm:$0xff]
    %v361 = vld [vmem:[%s3 + $0x48] sm:$0xff]
    %v362 = vld [vmem:[%s3 + $0x50] sm:$0xff]
    %v363 = vld [vmem:[%s3 + $0x58] sm:$0xff]
    %v364 = vld [vmem:[%s3 + $0x60] sm:$0xff]
    %v365 = vld [vmem:[%s3 + $0x68] sm:$0xff]
    %v366 = vld [vmem:[%s3 + $0x70] sm:$0xff]
    %v367 = vld [vmem:[%s3 + $0x78] sm:$0xff]
    %v368 = vld [vmem:[%s3 + $0x80] sm:$0xff]
    %v369 = vld [vmem:[%s3 + $0x88] sm:$0xff]
    %v370 = vld [vmem:[%s3 + $0x90] sm:$0xff]
    %v371 = vld [vmem:[%s3 + $0x98] sm:$0xff]
    %v372 = vld [vmem:[%s3 + $0xa0] sm:$0xff]
    %v373 = vld [vmem:[%s3 + $0xa8] sm:$0xff]
    %v374 = vld [vmem:[%s3 + $0xb0] sm:$0xff]
    %v375 = vld [vmem:[%s3 + $0xb8] sm:$0xff]
    %v376 = vld [vmem:[%s3 + $0xc0] sm:$0xff]
    %v377 = vld [vmem:[%s3 + $0xc8] sm:$0xff]
    %v378 = vld [vmem:[%s3 + $0xd0] sm:$0xff]
    %v379 = vld [vmem:[%s3 + $0xd8] sm:$0xff]
    %v380 = vld [vmem:[%s3 + $0xe0] sm:$0xff]
    %v381 = vld [vmem:[%s3 + $0xe8] sm:$0xff]
    %v382 = vld [vmem:[%s3 + $0xf0] sm:$0xff]
    %v383 = vld [vmem:[%s3 + $0xf8] sm:$0xff]
    %v384 = vld [vmem:[%s4] sm:$0xff]
    %v385 = vld [vmem:[%s4 + $0x8] sm:$0xff]
    %v386 = vld [vmem:[%s4 + $0x10] sm:$0xff]
    %v387 = vld [vmem:[%s4 + $0x18] sm:$0xff]
    %v388 = vld [vmem:[%s4 + $0x20] sm:$0xff]
    %v389 = vld [vmem:[%s4 + $0x28] sm:$0xff]
    %v390 = vld [vmem:[%s4 + $0x30] sm:$0xff]
    %v391 = vld [vmem:[%s4 + $0x38] sm:$0xff]
    %v392 = vld [vmem:[%s4 + $0x40] sm:$0xff]
    %v393 = vld [vmem:[%s4 + $0x48] sm:$0xff]
    %v394 = vld [vmem:[%s4 + $0x50] sm:$0xff]
    %v395 = vld [vmem:[%s4 + $0x58] sm:$0xff]
    %v396 = vld [vmem:[%s4 + $0x60] sm:$0xff]
    %v397 = vld [vmem:[%s4 + $0x68] sm:$0xff]
    %v398 = vld [vmem:[%s4 + $0x70] sm:$0xff]
    %v399 = vld [vmem:[%s4 + $0x78] sm:$0xff]
    %v400 = vld [vmem:[%s4 + $0x80] sm:$0xff]
    %v401 = vld [vmem:[%s4 + $0x88] sm:$0xff]
    %v402 = vld [vmem:[%s4 + $0x90] sm:$0xff]
    %v403 = vld [vmem:[%s4 + $0x98] sm:$0xff]
    %v404 = vld [vmem:[%s4 + $0xa0] sm:$0xff]
    %v405 = vld [vmem:[%s4 + $0xa8] sm:$0xff]
    %v406 = vld [vmem:[%s4 + $0xb0] sm:$0xff]
    %v407 = vld [vmem:[%s4 + $0xb8] sm:$0xff]
    %v408 = vld [vmem:[%s4 + $0xc0] sm:$0xff]
    %v409 = vld [vmem:[%s4 + $0xc8] sm:$0xff]
    %v410 = vld [vmem:[%s4 + $0xd0] sm:$0xff]
    %v411 = vld [vmem:[%s4 + $0xd8] sm:$0xff]
    %v412 = vld [vmem:[%s4 + $0xe0] sm:$0xff]
    %v413 = vld [vmem:[%s4 + $0xe8] sm:$0xff]
    %v414 = vld [vmem:[%s4 + $0xf0] sm:$0xff]
    %v415 = vld [vmem:[%s4 + $0xf8] sm:$0xff]
    %417 = vset.pattern.permute.xlu0 0
    %418 = vperm.xlu0 %417, %v384
    %v419 = vpop.permute.xlu0 %418
    %422 = vset.pattern.permute.xlu0 0
    %423 = vperm.xlu0 %422, %v385
    %v424 = vpop.permute.xlu0 %423
    %427 = vset.pattern.permute.xlu0 0
    %428 = vperm.xlu0 %427, %v386
    %v429 = vpop.permute.xlu0 %428
    %432 = vset.pattern.permute.xlu0 0
    %433 = vperm.xlu0 %432, %v387
    %v434 = vpop.permute.xlu0 %433
    %437 = vset.pattern.permute.xlu0 0
    %438 = vperm.xlu0 %437, %v388
    %v439 = vpop.permute.xlu0 %438
    %442 = vset.pattern.permute.xlu0 0
    %443 = vperm.xlu0 %442, %v389
    %v444 = vpop.permute.xlu0 %443
    %447 = vset.pattern.permute.xlu0 0
    %448 = vperm.xlu0 %447, %v390
    %v449 = vpop.permute.xlu0 %448
    %452 = vset.pattern.permute.xlu0 0
    %453 = vperm.xlu0 %452, %v391
    %v454 = vpop.permute.xlu0 %453
    %457 = vset.pattern.permute.xlu0 0
    %458 = vperm.xlu0 %457, %v392
    %v459 = vpop.permute.xlu0 %458
    %462 = vset.pattern.permute.xlu0 0
    %463 = vperm.xlu0 %462, %v393
    %v464 = vpop.permute.xlu0 %463
    %467 = vset.pattern.permute.xlu0 0
    %468 = vperm.xlu0 %467, %v394
    %v469 = vpop.permute.xlu0 %468
    %472 = vset.pattern.permute.xlu0 0
    %473 = vperm.xlu0 %472, %v395
    %v474 = vpop.permute.xlu0 %473
    %477 = vset.pattern.permute.xlu0 0
    %478 = vperm.xlu0 %477, %v396
    %v479 = vpop.permute.xlu0 %478
    %482 = vset.pattern.permute.xlu0 0
    %483 = vperm.xlu0 %482, %v397
    %v484 = vpop.permute.xlu0 %483
    %487 = vset.pattern.permute.xlu0 0
    %488 = vperm.xlu0 %487, %v398
    %v489 = vpop.permute.xlu0 %488
    %492 = vset.pattern.permute.xlu0 0
    %493 = vperm.xlu0 %492, %v399
    %v494 = vpop.permute.xlu0 %493
    %497 = vset.pattern.permute.xlu0 0
    %498 = vperm.xlu0 %497, %v400
    %v499 = vpop.permute.xlu0 %498
    %502 = vset.pattern.permute.xlu0 0
    %503 = vperm.xlu0 %502, %v401
    %v504 = vpop.permute.xlu0 %503
    %507 = vset.pattern.permute.xlu0 0
    %508 = vperm.xlu0 %507, %v402
    %v509 = vpop.permute.xlu0 %508
    %512 = vset.pattern.permute.xlu0 0
    %513 = vperm.xlu0 %512, %v403
    %v514 = vpop.permute.xlu0 %513
    %517 = vset.pattern.permute.xlu0 0
    %518 = vperm.xlu0 %517, %v404
    %v519 = vpop.permute.xlu0 %518
    %522 = vset.pattern.permute.xlu0 0
    %523 = vperm.xlu0 %522, %v405
    %v524 = vpop.permute.xlu0 %523
    %527 = vset.pattern.permute.xlu0 0
    %528 = vperm.xlu0 %527, %v406
    %v529 = vpop.permute.xlu0 %528
    %532 = vset.pattern.permute.xlu0 0
    %533 = vperm.xlu0 %532, %v407
    %v534 = vpop.permute.xlu0 %533
    %537 = vset.pattern.permute.xlu0 0
    %538 = vperm.xlu0 %537, %v408
    %v539 = vpop.permute.xlu0 %538
    %542 = vset.pattern.permute.xlu0 0
    %543 = vperm.xlu0 %542, %v409
    %v544 = vpop.permute.xlu0 %543
    %547 = vset.pattern.permute.xlu0 0
    %548 = vperm.xlu0 %547, %v410
    %v549 = vpop.permute.xlu0 %548
    %552 = vset.pattern.permute.xlu0 0
    %553 = vperm.xlu0 %552, %v411
    %v554 = vpop.permute.xlu0 %553
    %557 = vset.pattern.permute.xlu0 0
    %558 = vperm.xlu0 %557, %v412
    %v559 = vpop.permute.xlu0 %558
    %562 = vset.pattern.permute.xlu0 0
    %563 = vperm.xlu0 %562, %v413
    %v564 = vpop.permute.xlu0 %563
    %567 = vset.pattern.permute.xlu0 0
    %568 = vperm.xlu0 %567, %v414
    %v569 = vpop.permute.xlu0 %568
    %572 = vset.pattern.permute.xlu0 0
    %573 = vperm.xlu0 %572, %v415
    %v574 = vpop.permute.xlu0 %573
    %576 = vmatprep.subr.mxu0 0.0
    %577 = vmatpush1.msra.mxu0 %v351
    %578 = vmatprep.subr.mxu0 0.0
    %579 = vmatpush1.msra.mxu0 %v350
    %580 = vmatprep.subr.mxu0 0.0
    %581 = vmatpush1.msra.mxu0 %v349
    %582 = vmatprep.subr.mxu0 0.0
    %583 = vmatpush1.msra.mxu0 %v348
    %584 = vmatprep.subr.mxu0 0.0
    %585 = vmatpush1.msra.mxu0 %v347
    %586 = vmatprep.subr.mxu0 0.0
    %587 = vmatpush1.msra.mxu0 %v346
    %588 = vmatprep.subr.mxu0 0.0
    %589 = vmatpush1.msra.mxu0 %v345
    %590 = vmatprep.subr.mxu0 0.0
    %591 = vmatpush1.msra.mxu0 %v344
    %592 = vmatprep.subr.mxu0 0.0
    %593 = vmatpush1.msra.mxu0 %v343
    %594 = vmatprep.subr.mxu0 0.0
    %595 = vmatpush1.msra.mxu0 %v342
    %596 = vmatprep.subr.mxu0 0.0
    %597 = vmatpush1.msra.mxu0 %v341
    %598 = vmatprep.subr.mxu0 0.0
    %599 = vmatpush1.msra.mxu0 %v340
    %600 = vmatprep.subr.mxu0 0.0
    %601 = vmatpush1.msra.mxu0 %v339
    %602 = vmatprep.subr.mxu0 0.0
    %603 = vmatpush1.msra.mxu0 %v338
    %604 = vmatprep.subr.mxu0 0.0
    %605 = vmatpush1.msra.mxu0 %v337
    %606 = vmatprep.subr.mxu0 0.0
    %607 = vmatpush1.msra.mxu0 %v336
    %608 = vmatprep.subr.mxu0 0.0
    %609 = vmatpush2.msra.mxu0 0.0
    %610 = vmatprep.subr.mxu0 0.0
    %611 = vmatpush2.msra.mxu0 0.0
    %612 = vmatprep.subr.mxu0 0.0
    %613 = vmatpush2.msra.mxu0 0.0
    %614 = vmatprep.subr.mxu0 0.0
    %615 = vmatpush2.msra.mxu0 0.0
    %616 = vmatprep.subr.mxu0 0.0
    %617 = vmatpush2.msra.mxu0 0.0
    %618 = vmatprep.subr.mxu0 0.0
    %619 = vmatpush2.msra.mxu0 0.0
    %620 = vmatprep.subr.mxu0 0.0
    %621 = vmatpush2.msra.mxu0 0.0
    %622 = vmatprep.subr.mxu0 0.0
    %623 = vmatpush2.msra.mxu0 0.0
    %624 = vmatprep.subr.mxu0 0.0
    %625 = vmatpush2.msra.mxu0 0.0
    %626 = vmatprep.subr.mxu0 0.0
    %627 = vmatpush2.msra.mxu0 0.0
    %628 = vmatprep.subr.mxu0 0.0
    %629 = vmatpush2.msra.mxu0 0.0
    %630 = vmatprep.subr.mxu0 0.0
    %631 = vmatpush2.msra.mxu0 0.0
    %632 = vmatprep.subr.mxu0 0.0
    %633 = vmatpush2.msra.mxu0 0.0
    %634 = vmatprep.subr.mxu0 0.0
    %635 = vmatpush2.msra.mxu0 0.0
    %636 = vmatprep.subr.mxu0 0.0
    %637 = vmatpush2.msra.mxu0 0.0
    %638 = vmatprep.subr.mxu0 0.0
    %639 = vmatpush2.msra.mxu0 0.0
    %640 = vmatprep.mubr.f32.mxu0 0.0
    %641 = vmatmul.mubr.f32.gmra.mxu0 %v352
    %v642 = vpop.f32.mrf.mxu0
    %v643 = vadd.f32 %v419, %v642
    %v644 = vpop.f32.mrf.mxu0
    %645 = vmatprep.mubr.f32.mxu0 0.0
    %646 = vmatmul.mubr.f32.gmra.mxu0 %v353
    %v647 = vpop.f32.mrf.mxu0
    %v648 = vadd.f32 %v424, %v647
    %v649 = vpop.f32.mrf.mxu0
    %650 = vmatprep.mubr.f32.mxu0 0.0
    %651 = vmatmul.mubr.f32.gmra.mxu0 %v354
    %v652 = vpop.f32.mrf.mxu0
    %v653 = vadd.f32 %v429, %v652
    %v654 = vpop.f32.mrf.mxu0
    %655 = vmatprep.mubr.f32.mxu0 0.0
    %656 = vmatmul.mubr.f32.gmra.mxu0 %v355
    %v657 = vpop.f32.mrf.mxu0
    %v658 = vadd.f32 %v434, %v657
    %v659 = vpop.f32.mrf.mxu0
    %660 = vmatprep.mubr.f32.mxu0 0.0
    %661 = vmatmul.mubr.f32.gmra.mxu0 %v356
    %v662 = vpop.f32.mrf.mxu0
    %v663 = vadd.f32 %v439, %v662
    %v664 = vpop.f32.mrf.mxu0
    %665 = vmatprep.mubr.f32.mxu0 0.0
    %666 = vmatmul.mubr.f32.gmra.mxu0 %v357
    %v667 = vpop.f32.mrf.mxu0
    %v668 = vadd.f32 %v444, %v667
    %v669 = vpop.f32.mrf.mxu0
    %670 = vmatprep.mubr.f32.mxu0 0.0
    %671 = vmatmul.mubr.f32.gmra.mxu0 %v358
    %v672 = vpop.f32.mrf.mxu0
    %v673 = vadd.f32 %v449, %v672
    %v674 = vpop.f32.mrf.mxu0
    %675 = vmatprep.mubr.f32.mxu0 0.0
    %676 = vmatmul.mubr.f32.gmra.mxu0 %v359
    %v677 = vpop.f32.mrf.mxu0
    %v678 = vadd.f32 %v454, %v677
    %v679 = vpop.f32.mrf.mxu0
    %680 = vmatprep.mubr.f32.mxu0 0.0
    %681 = vmatmul.mubr.f32.gmra.mxu0 %v360
    %v682 = vpop.f32.mrf.mxu0
    %v683 = vadd.f32 %v459, %v682
    %v684 = vpop.f32.mrf.mxu0
    %685 = vmatprep.mubr.f32.mxu0 0.0
    %686 = vmatmul.mubr.f32.gmra.mxu0 %v361
    %v687 = vpop.f32.mrf.mxu0
    %v688 = vadd.f32 %v464, %v687
    %v689 = vpop.f32.mrf.mxu0
    %690 = vmatprep.mubr.f32.mxu0 0.0
    %691 = vmatmul.mubr.f32.gmra.mxu0 %v362
    %v692 = vpop.f32.mrf.mxu0
    %v693 = vadd.f32 %v469, %v692
    %v694 = vpop.f32.mrf.mxu0
    %695 = vmatprep.mubr.f32.mxu0 0.0
    %696 = vmatmul.mubr.f32.gmra.mxu0 %v363
    %v697 = vpop.f32.mrf.mxu0
    %v698 = vadd.f32 %v474, %v697
    %v699 = vpop.f32.mrf.mxu0
    %700 = vmatprep.mubr.f32.mxu0 0.0
    %701 = vmatmul.mubr.f32.gmra.mxu0 %v364
    %v702 = vpop.f32.mrf.mxu0
    %v703 = vadd.f32 %v479, %v702
    %v704 = vpop.f32.mrf.mxu0
    %705 = vmatprep.mubr.f32.mxu0 0.0
    %706 = vmatmul.mubr.f32.gmra.mxu0 %v365
    %v707 = vpop.f32.mrf.mxu0
    %v708 = vadd.f32 %v484, %v707
    %v709 = vpop.f32.mrf.mxu0
    %710 = vmatprep.mubr.f32.mxu0 0.0
    %711 = vmatmul.mubr.f32.gmra.mxu0 %v366
    %v712 = vpop.f32.mrf.mxu0
    %v713 = vadd.f32 %v489, %v712
    %v714 = vpop.f32.mrf.mxu0
    %715 = vmatprep.mubr.f32.mxu0 0.0
    %716 = vmatmul.mubr.f32.gmra.mxu0 %v367
    %v717 = vpop.f32.mrf.mxu0
    %v718 = vadd.f32 %v494, %v717
    %v719 = vpop.f32.mrf.mxu0
    %720 = vmatprep.mubr.f32.mxu0 0.0
    %721 = vmatmul.mubr.f32.gmra.mxu0 %v368
    %v722 = vpop.f32.mrf.mxu0
    %v723 = vadd.f32 %v499, %v722
    %v724 = vpop.f32.mrf.mxu0
    %725 = vmatprep.mubr.f32.mxu0 0.0
    %726 = vmatmul.mubr.f32.gmra.mxu0 %v369
    %v727 = vpop.f32.mrf.mxu0
    %v728 = vadd.f32 %v504, %v727
    %v729 = vpop.f32.mrf.mxu0
    %730 = vmatprep.mubr.f32.mxu0 0.0
    %731 = vmatmul.mubr.f32.gmra.mxu0 %v370
    %v732 = vpop.f32.mrf.mxu0
    %v733 = vadd.f32 %v509, %v732
    %v734 = vpop.f32.mrf.mxu0
    %735 = vmatprep.mubr.f32.mxu0 0.0
    %736 = vmatmul.mubr.f32.gmra.mxu0 %v371
    %v737 = vpop.f32.mrf.mxu0
    %v738 = vadd.f32 %v514, %v737
    %v739 = vpop.f32.mrf.mxu0
    %740 = vmatprep.mubr.f32.mxu0 0.0
    %741 = vmatmul.mubr.f32.gmra.mxu0 %v372
    %v742 = vpop.f32.mrf.mxu0
    %v743 = vadd.f32 %v519, %v742
    %v744 = vpop.f32.mrf.mxu0
    %745 = vmatprep.mubr.f32.mxu0 0.0
    %746 = vmatmul.mubr.f32.gmra.mxu0 %v373
    %v747 = vpop.f32.mrf.mxu0
    %v748 = vadd.f32 %v524, %v747
    %v749 = vpop.f32.mrf.mxu0
    %750 = vmatprep.mubr.f32.mxu0 0.0
    %751 = vmatmul.mubr.f32.gmra.mxu0 %v374
    %v752 = vpop.f32.mrf.mxu0
    %v753 = vadd.f32 %v529, %v752
    %v754 = vpop.f32.mrf.mxu0
    %755 = vmatprep.mubr.f32.mxu0 0.0
    %756 = vmatmul.mubr.f32.gmra.mxu0 %v375
    %v757 = vpop.f32.mrf.mxu0
    %v758 = vadd.f32 %v534, %v757
    %v759 = vpop.f32.mrf.mxu0
    %760 = vmatprep.mubr.f32.mxu0 0.0
    %761 = vmatmul.mubr.f32.gmra.mxu0 %v376
    %v762 = vpop.f32.mrf.mxu0
    %v763 = vadd.f32 %v539, %v762
    %v764 = vpop.f32.mrf.mxu0
    %765 = vmatprep.mubr.f32.mxu0 0.0
    %766 = vmatmul.mubr.f32.gmra.mxu0 %v377
    %v767 = vpop.f32.mrf.mxu0
    %v768 = vadd.f32 %v544, %v767
    %v769 = vpop.f32.mrf.mxu0
    %770 = vmatprep.mubr.f32.mxu0 0.0
    %771 = vmatmul.mubr.f32.gmra.mxu0 %v378
    %v772 = vpop.f32.mrf.mxu0
    %v773 = vadd.f32 %v549, %v772
    %v774 = vpop.f32.mrf.mxu0
    %775 = vmatprep.mubr.f32.mxu0 0.0
    %776 = vmatmul.mubr.f32.gmra.mxu0 %v379
    %v777 = vpop.f32.mrf.mxu0
    %v778 = vadd.f32 %v554, %v777
    %v779 = vpop.f32.mrf.mxu0
    %780 = vmatprep.mubr.f32.mxu0 0.0
    %781 = vmatmul.mubr.f32.gmra.mxu0 %v380
    %v782 = vpop.f32.mrf.mxu0
    %v783 = vadd.f32 %v559, %v782
    %v784 = vpop.f32.mrf.mxu0
    %785 = vmatprep.mubr.f32.mxu0 0.0
    %786 = vmatmul.mubr.f32.gmra.mxu0 %v381
    %v787 = vpop.f32.mrf.mxu0
    %v788 = vadd.f32 %v564, %v787
    %v789 = vpop.f32.mrf.mxu0
    %790 = vmatprep.mubr.f32.mxu0 0.0
    %791 = vmatmul.mubr.f32.gmra.mxu0 %v382
    %v792 = vpop.f32.mrf.mxu0
    %v793 = vadd.f32 %v569, %v792
    %v794 = vpop.f32.mrf.mxu0
    %795 = vmatprep.mubr.f32.mxu0 0.0
    %796 = vmatmul.mubr.f32.gmra.mxu0 %v383
    %v797 = vpop.f32.mrf.mxu0
    %v798 = vadd.f32 %v574, %v797
    %v799 = vpop.f32.mrf.mxu0
    %800 = vdwg.mxu0
    %v801 = vtanh.pop %v643
    %v802 = vtanh.pop %v648
    %v803 = vtanh.pop %v653
    %v804 = vtanh.pop %v658
    %v805 = vtanh.pop %v663
    %v806 = vtanh.pop %v668
    %v807 = vtanh.pop %v673
    %v808 = vtanh.pop %v678
    %v809 = vtanh.pop %v683
    %v810 = vtanh.pop %v688
    %v811 = vtanh.pop %v693
    %v812 = vtanh.pop %v698
    %v813 = vtanh.pop %v703
    %v814 = vtanh.pop %v708
    %v815 = vtanh.pop %v713
    %v816 = vtanh.pop %v718
    %v817 = vtanh.pop %v723
    %v818 = vtanh.pop %v728
    %v819 = vtanh.pop %v733
    %v820 = vtanh.pop %v738
    %v821 = vtanh.pop %v743
    %v822 = vtanh.pop %v748
    %v823 = vtanh.pop %v753
    %v824 = vtanh.pop %v758
    %v825 = vtanh.pop %v763
    %v826 = vtanh.pop %v768
    %v827 = vtanh.pop %v773
    %v828 = vtanh.pop %v778
    %v829 = vtanh.pop %v783
    %v830 = vtanh.pop %v788
    %v831 = vtanh.pop %v793
    %v832 = vtanh.pop %v798
    %v833 = vld [vmem:[%s5] sm:$0x3]
    %v834 = vld [vmem:[#allocation2] sm:$0x1]
    %836 = vset.pattern.permute.xlu0 0
    %837 = vperm.xlu0 %836, %v834
    %v838 = vpop.permute.xlu0 %837
    %v840 = vlaneseq
    %v841 = vshrl.u32 %v840, 7
    %v842 = vsub.s32 0, %v841
    %v843 = vrot.slane %v838, %v842
    %v845 = vlaneseq
    %v846 = vshrl.u32 %v845, 7
    %v847 = vsub.s32 0, %v846
    %v848 = vrot.slane %v833, %v847
    %v849 = vlaneseq
    %v850 = vshrl.u32 %v849, 7
    %v851 = vsub.s32 1, %v850
    %v852 = vrot.slane %v833, %v851
    %855 = vmatprep.subr.mxu0 0.0
    %856 = vmatpush1.msra.mxu0 %v816
    %857 = vmatprep.subr.mxu0 0.0
    %858 = vmatpush1.msra.mxu0 %v815
    %859 = vmatprep.subr.mxu0 0.0
    %860 = vmatpush1.msra.mxu0 %v814
    %861 = vmatprep.subr.mxu0 0.0
    %862 = vmatpush1.msra.mxu0 %v813
    %863 = vmatprep.subr.mxu0 0.0
    %864 = vmatpush1.msra.mxu0 %v812
    %865 = vmatprep.subr.mxu0 0.0
    %866 = vmatpush1.msra.mxu0 %v811
    %867 = vmatprep.subr.mxu0 0.0
    %868 = vmatpush1.msra.mxu0 %v810
    %869 = vmatprep.subr.mxu0 0.0
    %870 = vmatpush1.msra.mxu0 %v809
    %871 = vmatprep.subr.mxu0 0.0
    %872 = vmatpush1.msra.mxu0 %v808
    %873 = vmatprep.subr.mxu0 0.0
    %874 = vmatpush1.msra.mxu0 %v807
    %875 = vmatprep.subr.mxu0 0.0
    %876 = vmatpush1.msra.mxu0 %v806
    %877 = vmatprep.subr.mxu0 0.0
    %878 = vmatpush1.msra.mxu0 %v805
    %879 = vmatprep.subr.mxu0 0.0
    %880 = vmatpush1.msra.mxu0 %v804
    %881 = vmatprep.subr.mxu0 0.0
    %882 = vmatpush1.msra.mxu0 %v803
    %883 = vmatprep.subr.mxu0 0.0
    %884 = vmatpush1.msra.mxu0 %v802
    %885 = vmatprep.subr.mxu0 0.0
    %886 = vmatpush1.msra.mxu0 %v801
    %887 = vmatprep.subr.mxu0 0.0
    %888 = vmatpush2.msra.mxu0 %v832
    %889 = vmatprep.subr.mxu0 0.0
    %890 = vmatpush2.msra.mxu0 %v831
    %891 = vmatprep.subr.mxu0 0.0
    %892 = vmatpush2.msra.mxu0 %v830
    %893 = vmatprep.subr.mxu0 0.0
    %894 = vmatpush2.msra.mxu0 %v829
    %895 = vmatprep.subr.mxu0 0.0
    %896 = vmatpush2.msra.mxu0 %v828
    %897 = vmatprep.subr.mxu0 0.0
    %898 = vmatpush2.msra.mxu0 %v827
    %899 = vmatprep.subr.mxu0 0.0
    %900 = vmatpush2.msra.mxu0 %v826
    %901 = vmatprep.subr.mxu0 0.0
    %902 = vmatpush2.msra.mxu0 %v825
    %903 = vmatprep.subr.mxu0 0.0
    %904 = vmatpush2.msra.mxu0 %v824
    %905 = vmatprep.subr.mxu0 0.0
    %906 = vmatpush2.msra.mxu0 %v823
    %907 = vmatprep.subr.mxu0 0.0
    %908 = vmatpush2.msra.mxu0 %v822
    %909 = vmatprep.subr.mxu0 0.0
    %910 = vmatpush2.msra.mxu0 %v821
    %911 = vmatprep.subr.mxu0 0.0
    %912 = vmatpush2.msra.mxu0 %v820
    %913 = vmatprep.subr.mxu0 0.0
    %914 = vmatpush2.msra.mxu0 %v819
    %915 = vmatprep.subr.mxu0 0.0
    %916 = vmatpush2.msra.mxu0 %v818
    %917 = vmatprep.subr.mxu0 0.0
    %918 = vmatpush2.msra.mxu0 %v817
    %919 = vmatprep.mubr.f32.mxu0 %v852
    %920 = vmatmul.mubr.f32.gmra.mxu0 %v848
    %v921 = vpop.f32.mrf.mxu0
    %v922 = vadd.f32 %v843, %v921
    %v923 = vpop.f32.mrf.mxu0
    %924 = vdwg.mxu0
    %vm925 = vcmask 57344
    %926 = vst.msk [vmem:[#allocation3] sm:$0x1] %vm925, %v922
    // Predicated region
    $region30: #{value_network_forward.1} parent=1 // pred_check
      _
    $region31: #{value_network_forward.1} parent=1 // pred_check_branch
      %928 = sbr.rel (0) target = $region33
    $region32: #{value_network_forward.1} parent=1 // pred_region
      %s930 = ssub.s32 16, 16
      %931 = vsyncadd [#allocation4], %s930
      %s933 = sshll.u32 [#allocation3], 4
      %s934 = int_to_ptr.vmem [resolvable:$true] %s933
      %936 = dma.vmem_to_hbm [thread:$0]  %s934, 16, %s7, [#allocation4]
    $region33: #{value_network_forward.1} parent=1 // pred_fallthru
      _
    // Predicated region
    $region34: #{value_network_forward.1} parent=1 // pred_check
      _
    $region35: #{value_network_forward.1} parent=1 // pred_check_branch
      %938 = sbr.rel (0) target = $region37
    $region36: #{value_network_forward.1} parent=1 // pred_region
      %939 = dma.done [#allocation4], 16
    $region37: #{value_network_forward.1} parent=1 // pred_fallthru
      _
    %940 = vsyncpa [#allocation4], 1

</llo_original>
